<compile_context>
chip_gen: v7x
topology: tpu7x:2x2x1
jax: 0.10.0
libtpu: 0.0.40
codegen_flags: <defaults>
</compile_context>

<pallas_src>
import functools

import jax
import jax.numpy as jnp
from jax.experimental import pallas as pl
from jax.experimental.pallas import tpu as pltpu


def _round_up(a: int, b: int) -> int:
    return (a + b - 1) // b * b


def _cdiv(a: int, b: int) -> int:
    return (a + b - 1) // b


def _vmem_capacity_bytes() -> int:
    """Best-effort query of physical VMEM; conservative (v7x) fallback."""
    try:
        return int(pltpu.get_tpu_info().vmem_capacity_bytes)
    except Exception:
        return 64 * 1024 * 1024


def _default_tiles():
    """Generation-aware tile caps (tm_cap, tn_cap, tk_cap)."""
    vmem = _vmem_capacity_bytes()
    if vmem >= 96 * 1024 * 1024:
        # v5e / v6e: 128 MiB VMEM; larger tiles push the f32 path toward the MXU roofline.
        return 768, 768, 512
    # v7x: 64 MiB VMEM per TC; 512x512 is already compute-bound at 3.2 TB/s HBM.
    return 512, 512, 512


def _vmem_limit_bytes() -> int:
    return min(3 * _vmem_capacity_bytes() // 4, 96 * 1024 * 1024)


def _fit_tile(dim: int, cap: int, align: int) -> int:
    """Largest tile <= cap (aligned) that keeps padding small for `dim`."""
    tile = min(cap, _round_up(dim, align))
    n_blocks = _cdiv(dim, tile)
    return _round_up(_cdiv(dim, n_blocks), align)


def _linear_kernel(x_ref, w_ref, b_ref, o_ref, acc_ref):
    # x_ref: (tm, tk), w_ref: (tk, tn), b_ref: (1, tn), o_ref: (tm, tn)
    k = pl.program_id(2)

    @pl.when(k == 0)
    def _init():
        acc_ref[...] = jnp.zeros_like(acc_ref)

    acc_ref[...] += jnp.dot(
        x_ref[...], w_ref[...], preferred_element_type=jnp.float32
    )

    @pl.when(k == pl.num_programs(2) - 1)
    def _finalize():
        # Bias is K-invariant: add it exactly once per (i, j) output tile.
        o_ref[...] = (acc_ref[...] + b_ref[...]).astype(o_ref.dtype)


@functools.partial(
    jax.jit, static_argnames=("out_features", "tm", "tn", "tk", "vmem_limit")
)
def _linear_fwd(x2d, w_p, b_p, *, out_features, tm, tn, tk, vmem_limit):
    """y[:M, :out_features] = x2d @ W.T + b, using pre-prepped padded W/b."""
    M, K = x2d.shape
    Kp, Np = w_p.shape
    assert Kp % tk == 0 and Np % tn == 0

    Mp = _round_up(M, tm)
    # K zero-padding is required for the reduction; M padding only fills the grid.
    if (Mp, Kp) != (M, K):
        x_p = jnp.zeros((Mp, Kp), x2d.dtype).at[:M, :K].set(x2d)
    else:
        x_p = x2d

    grid = (Mp // tm, Np // tn, Kp // tk)

    out_padded = pl.pallas_call(
        _linear_kernel,
        out_shape=jax.ShapeDtypeStruct((Mp, Np), x2d.dtype),
        grid_spec=pltpu.PrefetchScalarGridSpec(
            num_scalar_prefetch=0,
            grid=grid,
            in_specs=[
                pl.BlockSpec((tm, tk), lambda i, j, k: (i, k)),   # x tile
                pl.BlockSpec((tk, tn), lambda i, j, k: (k, j)),   # W (K, N) tile
                pl.BlockSpec((1, tn), lambda i, j, k: (0, j)),    # bias tile
            ],
            out_specs=pl.BlockSpec((tm, tn), lambda i, j, k: (i, j)),
            scratch_shapes=[pltpu.VMEM((tm, tn), jnp.float32)],
        ),
        compiler_params=pltpu.CompilerParams(
            dimension_semantics=("parallel", "parallel", "arbitrary"),
            vmem_limit_bytes=vmem_limit,
        ),
    )(x_p, w_p, b_p)

    return out_padded[:M, :out_features]


class MutilossFinalLayer:
    """JAX/Pallas port of Mutiloss_Final_Layer (frozen weight = ones * layer_mask)."""

    def __init__(self, in_features, out_features, layer_mask=None):
        self.in_features = int(in_features)
        self.out_features = int(out_features)

        weight = jnp.ones((out_features, in_features), dtype=jnp.float32)
        if layer_mask is not None:
            weight = weight * jnp.asarray(layer_mask, dtype=jnp.float32)
        bias = jnp.zeros((out_features,), dtype=jnp.float32)
        self.weight = weight   # [N, K], PyTorch nn.Linear layout (for reference)
        self.bias = bias       # [N]

        # Generation-aware tile selection (tn/tk fixed at construction; tm per-call).
        tm_cap, tn_cap, tk_cap = _default_tiles()
        self._tm_cap = tm_cap
        self._tn = _fit_tile(out_features, tn_cap, 128)
        self._tk = _fit_tile(in_features, tk_cap, 128)
        self._vmem_limit = _vmem_limit_bytes()

        # One-time layout prep (hoisted out of the per-call path):
        #   weight [N, K] -> zero-padded [Kp, Np]; bias [N] -> [1, Np].
        Np = _round_up(out_features, self._tn)
        Kp = _round_up(in_features, self._tk)
        self._w_p = (
            jnp.zeros((Kp, Np), jnp.float32)
            .at[:in_features, :out_features]
            .set(weight.T)
        )
        self._b_p = jnp.zeros((1, Np), jnp.float32).at[0, :out_features].set(bias)

    def __call__(self, x):
        x = jnp.asarray(x, dtype=jnp.float32)
        lead = x.shape[:-1]
        K = x.shape[-1]
        assert K == self.in_features, "in_features mismatch"
        x2d = x.reshape(-1, K)
        M = x2d.shape[0]

        tm = _fit_tile(M, self._tm_cap, 8)
        y2d = _linear_fwd(
            x2d,
            self._w_p,
            self._b_p,
            out_features=self.out_features,
            tm=tm,
            tn=self._tn,
            tk=self._tk,
            vmem_limit=self._vmem_limit,
        )
        return y2d.reshape(lead + (self.out_features,))


if __name__ == "__main__":
    # Small shapes consistent with the module: batch=8, in_features=32, out_features=16.
    # NOTE: at these sizes the kernel is pure launch overhead; this exists to validate
    # correctness. Real use is large M/N/K where the tiled kernel pays off.
    batch, in_features, out_features = 8, 32, 16

    key = jax.random.PRNGKey(0)
    kx, km = jax.random.split(key)

    x = jax.random.normal(kx, (batch, in_features), dtype=jnp.float32)

    # Deterministic binary layer mask over the weight matrix (out_features, in_features).
    layer_mask = (
        jax.random.uniform(km, (out_features, in_features)) > 0.5
    ).astype(jnp.float32)

    layer = MutilossFinalLayer(in_features, out_features, layer_mask)

    y = layer(x)
    y = jax.block_until_ready(y)

    # Reference check (same semantics as torch.matmul(x, W.t()) + b).
    y_ref = x @ layer.weight.T + layer.bias
    assert y.shape == (batch, out_features)
    assert jnp.allclose(y, y_ref, atol=1e-5, rtol=1e-5), "mismatch vs reference"

    print("KERNEL_OK")
</pallas_src>

<mosaic_0001>
module attributes {stable_mosaic.version = 11 : i64} {
  func.func @_linear_kernel(%arg0: i32, %arg1: i32, %arg2: i32, %arg3: memref<8x128xf32, #tpu.memory_space<vmem>>, %arg4: memref<128x128xf32, #tpu.memory_space<vmem>>, %arg5: memref<1x128xf32, #tpu.memory_space<vmem>>, %arg6: memref<8x128xf32, #tpu.memory_space<vmem>>, %arg7: memref<8x128xf32, #tpu.memory_space<vmem>>) attributes {dimension_semantics = [#tpu.dimension_semantics<parallel>, #tpu.dimension_semantics<parallel>, #tpu.dimension_semantics<arbitrary>], iteration_bounds = array<i64: 1, 1, 1>, scalar_prefetch = 0 : i64, scratch_operands = 1 : i64, tpu.core_type = #tpu.core_type<tc>, window_params = [{transform_indices = @transform_0, window_bounds = array<i64: 8, 128>}, {transform_indices = @transform_1, window_bounds = array<i64: 128, 128>}, {transform_indices = @transform_2, window_bounds = array<i64: 1, 128>}, {transform_indices = @transform_3, window_bounds = array<i64: 8, 128>}]} {
    %c0_i32 = arith.constant 0 : i32
    %0 = arith.cmpi eq, %arg2, %c0_i32 : i32
    %1 = arith.extui %0 : i1 to i32
    %c0_i32_0 = arith.constant 0 : i32
    %2 = arith.cmpi ne, %1, %c0_i32_0 : i32
    scf.if %2 {
      %cst_10 = arith.constant 0.000000e+00 : f32
      %12 = vector.broadcast %cst_10 : f32 to vector<8x128xf32>
      %c0_11 = arith.constant 0 : index
      %c0_12 = arith.constant 0 : index
      %13 = vector.load %arg7[%c0_11, %c0_12] : memref<8x128xf32, #tpu.memory_space<vmem>>, vector<8x128xf32>
      tpu.vector_store %arg7[%c0_11, %c0_12], %12 {strides = array<i32>} : memref<8x128xf32, #tpu.memory_space<vmem>>, vector<8x128xf32>,
    } else {
    }
    %c0 = arith.constant 0 : index
    %c0_1 = arith.constant 0 : index
    %3 = vector.load %arg7[%c0, %c0_1] : memref<8x128xf32, #tpu.memory_space<vmem>>, vector<8x128xf32>
    %c0_2 = arith.constant 0 : index
    %c0_3 = arith.constant 0 : index
    %4 = vector.load %arg3[%c0_2, %c0_3] : memref<8x128xf32, #tpu.memory_space<vmem>>, vector<8x128xf32>
    %c0_4 = arith.constant 0 : index
    %c0_5 = arith.constant 0 : index
    %5 = vector.load %arg4[%c0_4, %c0_5] : memref<128x128xf32, #tpu.memory_space<vmem>>, vector<128x128xf32>
    %cst = arith.constant dense<0.000000e+00> : vector<8x128xf32>
    %6 = tpu.matmul %4, %5, %cst {dimension_numbers = #tpu.dot_dimension_numbers<[1], [0], [0], [1], [0, 0, 1, 1], [], []>} : vector<8x128xf32>, vector<128x128xf32>, vector<8x128xf32> -> vector<8x128xf32>
    %7 = arith.addf %3, %6 : vector<8x128xf32>
    %c0_6 = arith.constant 0 : index
    %c0_7 = arith.constant 0 : index
    %8 = vector.load %arg7[%c0_6, %c0_7] : memref<8x128xf32, #tpu.memory_space<vmem>>, vector<8x128xf32>
    tpu.vector_store %arg7[%c0_6, %c0_7], %7 {strides = array<i32>} : memref<8x128xf32, #tpu.memory_space<vmem>>, vector<8x128xf32>,
    %c0_i32_8 = arith.constant 0 : i32
    %9 = arith.cmpi eq, %arg2, %c0_i32_8 : i32
    %10 = arith.extui %9 : i1 to i32
    %c0_i32_9 = arith.constant 0 : i32
    %11 = arith.cmpi ne, %10, %c0_i32_9 : i32
    scf.if %11 {
      %c0_10 = arith.constant 0 : index
      %c0_11 = arith.constant 0 : index
      %12 = vector.load %arg7[%c0_10, %c0_11] : memref<8x128xf32, #tpu.memory_space<vmem>>, vector<8x128xf32>
      %c0_12 = arith.constant 0 : index
      %c0_13 = arith.constant 0 : index
      %13 = vector.load %arg5[%c0_12, %c0_13] : memref<1x128xf32, #tpu.memory_space<vmem>>, vector<1x128xf32>
      %14 = vector.broadcast %13 : vector<1x128xf32> to vector<8x128xf32>
      %15 = arith.addf %12, %14 : vector<8x128xf32>
      %c0_14 = arith.constant 0 : index
      %c0_15 = arith.constant 0 : index
      %16 = vector.load %arg6[%c0_14, %c0_15] : memref<8x128xf32, #tpu.memory_space<vmem>>, vector<8x128xf32>
      tpu.vector_store %arg6[%c0_14, %c0_15], %15 {strides = array<i32>} : memref<8x128xf32, #tpu.memory_space<vmem>>, vector<8x128xf32>,
    } else {
    }
    return
  }
  func.func @transform_0(%arg0: i32, %arg1: i32, %arg2: i32) -> (i32, i32) {
    %c0_i32 = arith.constant 0 : i32
    return %arg0, %arg2 : i32, i32
  }
  func.func @transform_1(%arg0: i32, %arg1: i32, %arg2: i32) -> (i32, i32) {
    %c0_i32 = arith.constant 0 : i32
    return %arg2, %arg1 : i32, i32
  }
  func.func @transform_2(%arg0: i32, %arg1: i32, %arg2: i32) -> (i32, i32) {
    %c0_i32 = arith.constant 0 : i32
    %c0_i32_0 = arith.constant 0 : i32
    return %c0_i32, %arg1 : i32, i32
  }
  func.func @transform_3(%arg0: i32, %arg1: i32, %arg2: i32) -> (i32, i32) {
    %c0_i32 = arith.constant 0 : i32
    return %arg0, %arg1 : i32, i32
  }
}

</mosaic_0001>

<llo_original>
// kernel: _linear_fwd.1
$region0: #{_linear_fwd.1}
  #allocation0 [shape = 'u32[]', space=smem, size = 0x4, offset = 0x4, fixed_abs, tag = 'smem constant byte address 0x4 - core index']
  #allocation1 [shape = 'u32[144,128]{1,0:T(1,128)}', space=vmem, size = 0x12000, scoped, tag = 'internal scratch']
  #allocation2 [shape = 'f32[8,128]{1,0:T(8,128)}', space=vmem, size = 0x1000, scoped, tag = 'scratch operand']
  %s0 = inlined_call_operand.vmem [shape: f32[8,128], index: 0, kind: input, shape index: {}]
  %s1 = inlined_call_operand.hbm [shape: f32[128,128], index: 1, kind: input, shape index: {}]
  %s2 = inlined_call_operand.vmem [shape: f32[1,128], index: 2, kind: input, shape index: {}]
  %s3 = inlined_call_operand.hbm [shape: f32[8,128], index: 3, kind: output, shape index: {}]
  %s4 = sld [smem:[#allocation0]]
  $region34: #{_linear_fwd.1} parent=0
    _
  %s6 = ssub.s32 1, %s4
  %s7 = scalar_select 0, %s6, %s4
  $region1: #{_linear_fwd.1} parent=0
    #allocation3 [shape = 'u8[65536]{0}', space=vmem, size = 0x10000, scoped, tag = 'input window, operand 1, single buffered']
    #allocation4 [shape = 's32[1]{0}', space=sflag, size = 0x4, scoped, tag = 'scoped memory for _linear_fwd.1']
    #allocation5 [shape = 's32[1]{0}', space=sflag, size = 0x4, scoped, tag = 'scoped memory for _linear_fwd.1']
    #allocation6 [shape = 'u8[4096]{0}', space=vmem, size = 0x1000, scoped, tag = 'output window, operand 0, single buffered']
    %8 = vsyncpa [#allocation4], 0
    %9 = vsyncpa [#allocation5], 0
    // Predicated region
    $region2: #{_linear_fwd.1} parent=1 // pred_check
      _
    $region3: #{_linear_fwd.1} parent=1 // pred_check_branch
      %11 = sbr.rel (0) target = $region5
    $region4: #{_linear_fwd.1} parent=1 // pred_region
      _
    $region5: #{_linear_fwd.1} parent=1 // pred_fallthru
      _
    // Predicated region
    $region6: #{_linear_fwd.1} parent=1 // pred_check
      _
    $region7: #{_linear_fwd.1} parent=1 // pred_check_branch
      %13 = sbr.rel (0) target = $region9
    $region8: #{_linear_fwd.1} parent=1 // pred_region
      %s15 = ssub.s32 2048, 2048
      %16 = vsyncadd [#allocation4], %s15
      %s17 = sshll.u32 [#allocation3], 4
      %s18 = int_to_ptr.vmem [resolvable:$true] %s17
      %23 = dma.hbm_to_vmem [thread:$0]  %s1, 2048, %s18, [#allocation4], 128, 128, 8
    $region9: #{_linear_fwd.1} parent=1 // pred_fallthru
      _
    // Predicated region
    $region10: #{_linear_fwd.1} parent=1 // pred_check
      _
    $region11: #{_linear_fwd.1} parent=1 // pred_check_branch
      %25 = sbr.rel (0) target = $region13
    $region12: #{_linear_fwd.1} parent=1 // pred_region
      _
    $region13: #{_linear_fwd.1} parent=1 // pred_fallthru
      _
    // Predicated region
    $region14: #{_linear_fwd.1} parent=1 // pred_check
      _
    $region15: #{_linear_fwd.1} parent=1 // pred_check_branch
      %27 = sbr.rel (0) target = $region17
    $region16: #{_linear_fwd.1} parent=1 // pred_region
      %28 = dma.done [#allocation4], 2048
    $region17: #{_linear_fwd.1} parent=1 // pred_fallthru
      _
    %p29 = scmp.eq.s32.totalorder 0, 0
    // Predicated region
    $region18: #{_linear_fwd.1} parent=1 // pred_check
      %p30 = pneg %p29
    $region19: #{_linear_fwd.1} parent=1 // pred_check_branch
      %32 = sbr.rel (%p30) target = $region21
    $region20: #{_linear_fwd.1} parent=1 // pred_region
      %33 = vst [vmem:[#allocation2] sm:$0xff] 0.0
    $region21: #{_linear_fwd.1} parent=1 // pred_fallthru
      _
    %v34 = vld [vmem:[#allocation2] sm:$0xff]
    %v35 = vld [vmem:[%s0] sm:$0xff]
    %v36 = vld [vmem:[#allocation3] sm:$0xff]
    %v37 = vld [vmem:[#allocation3 + $0x8] sm:$0xff]
    %v38 = vld [vmem:[#allocation3 + $0x10] sm:$0xff]
    %v39 = vld [vmem:[#allocation3 + $0x18] sm:$0xff]
    %v40 = vld [vmem:[#allocation3 + $0x20] sm:$0xff]
    %v41 = vld [vmem:[#allocation3 + $0x28] sm:$0xff]
    %v42 = vld [vmem:[#allocation3 + $0x30] sm:$0xff]
    %v43 = vld [vmem:[#allocation3 + $0x38] sm:$0xff]
    %v44 = vld [vmem:[#allocation3 + $0x40] sm:$0xff]
    %v45 = vld [vmem:[#allocation3 + $0x48] sm:$0xff]
    %v46 = vld [vmem:[#allocation3 + $0x50] sm:$0xff]
    %v47 = vld [vmem:[#allocation3 + $0x58] sm:$0xff]
    %v48 = vld [vmem:[#allocation3 + $0x60] sm:$0xff]
    %v49 = vld [vmem:[#allocation3 + $0x68] sm:$0xff]
    %v50 = vld [vmem:[#allocation3 + $0x70] sm:$0xff]
    %v51 = vld [vmem:[#allocation3 + $0x78] sm:$0xff]
    %52 = vmatprep.subr.mxu0 0.0
    %53 = vmatpush1.msra.mxu0 %v36
    %54 = vmatprep.subr.mxu0 0.0
    %55 = vmatpush1.msra.mxu0 %v37
    %56 = vmatprep.subr.mxu0 0.0
    %57 = vmatpush1.msra.mxu0 %v38
    %58 = vmatprep.subr.mxu0 0.0
    %59 = vmatpush1.msra.mxu0 %v39
    %60 = vmatprep.subr.mxu0 0.0
    %61 = vmatpush1.msra.mxu0 %v40
    %62 = vmatprep.subr.mxu0 0.0
    %63 = vmatpush1.msra.mxu0 %v41
    %64 = vmatprep.subr.mxu0 0.0
    %65 = vmatpush1.msra.mxu0 %v42
    %66 = vmatprep.subr.mxu0 0.0
    %67 = vmatpush1.msra.mxu0 %v43
    %68 = vmatprep.subr.mxu0 0.0
    %69 = vmatpush1.msra.mxu0 %v44
    %70 = vmatprep.subr.mxu0 0.0
    %71 = vmatpush1.msra.mxu0 %v45
    %72 = vmatprep.subr.mxu0 0.0
    %73 = vmatpush1.msra.mxu0 %v46
    %74 = vmatprep.subr.mxu0 0.0
    %75 = vmatpush1.msra.mxu0 %v47
    %76 = vmatprep.subr.mxu0 0.0
    %77 = vmatpush1.msra.mxu0 %v48
    %78 = vmatprep.subr.mxu0 0.0
    %79 = vmatpush1.msra.mxu0 %v49
    %80 = vmatprep.subr.mxu0 0.0
    %81 = vmatpush1.msra.mxu0 %v50
    %82 = vmatprep.subr.mxu0 0.0
    %83 = vmatpush1.msra.mxu0 %v51
    %84 = vmatprep.subr.mxu0 0.0
    %85 = vmatpush1.msra.mxu0 0.0
    %86 = vmatprep.subr.mxu0 0.0
    %87 = vmatpush1.msra.mxu0 0.0
    %88 = vmatprep.subr.mxu0 0.0
    %89 = vmatpush1.msra.mxu0 0.0
    %90 = vmatprep.subr.mxu0 0.0
    %91 = vmatpush1.msra.mxu0 0.0
    %92 = vmatprep.subr.mxu0 0.0
    %93 = vmatpush1.msra.mxu0 0.0
    %94 = vmatprep.subr.mxu0 0.0
    %95 = vmatpush1.msra.mxu0 0.0
    %96 = vmatprep.subr.mxu0 0.0
    %97 = vmatpush1.msra.mxu0 0.0
    %98 = vmatprep.subr.mxu0 0.0
    %99 = vmatpush1.msra.mxu0 0.0
    %100 = vmatprep.subr.mxu0 0.0
    %101 = vmatpush1.msra.mxu0 0.0
    %102 = vmatprep.subr.mxu0 0.0
    %103 = vmatpush1.msra.mxu0 0.0
    %104 = vmatprep.subr.mxu0 0.0
    %105 = vmatpush1.msra.mxu0 0.0
    %106 = vmatprep.subr.mxu0 0.0
    %107 = vmatpush1.msra.mxu0 0.0
    %108 = vmatprep.subr.mxu0 0.0
    %109 = vmatpush1.msra.mxu0 0.0
    %110 = vmatprep.subr.mxu0 0.0
    %111 = vmatpush1.msra.mxu0 0.0
    %112 = vmatprep.subr.mxu0 0.0
    %113 = vmatpush1.msra.mxu0 0.0
    %114 = vmatprep.subr.mxu0 0.0
    %115 = vmatpush1.msra.mxu0 0.0
    %116 = vmatprep.mubr.f32.mxu0 0.0
    %117 = vmatmul.mubr.f32.gmra.mrb[0].mxu0 %v35
    %v118 = vpop.f32.mrb[0].mxu0
    %v119 = vadd.f32 0.0, %v118
    %v120 = vpop.f32.mrb[0].mxu0
    %121 = vdwg.mxu0
    %v122 = vadd.f32 %v34, %v119
    %123 = vst [vmem:[#allocation2] sm:$0xff] %v122
    // Predicated region
    $region22: #{_linear_fwd.1} parent=1 // pred_check
      %p124 = pneg %p29
    $region23: #{_linear_fwd.1} parent=1 // pred_check_branch
      %126 = sbr.rel (%p124) target = $region25
    $region24: #{_linear_fwd.1} parent=1 // pred_region
      %v127 = vld [vmem:[#allocation2] sm:$0xff]
      %v128 = vld [vmem:[%s2] sm:$0x1]
      %v130 = vlaneseq
      %v131 = vshrl.u32 %v130, 7
      %v132 = vsub.s32 0, %v131
      %v133 = vrot.slane %v128, %v132
      %v135 = vadd.f32 %v127, %v133
      %136 = vst [vmem:[#allocation6] sm:$0xff] %v135
    $region25: #{_linear_fwd.1} parent=1 // pred_fallthru
      _
    // Predicated region
    $region26: #{_linear_fwd.1} parent=1 // pred_check
      _
    $region27: #{_linear_fwd.1} parent=1 // pred_check_branch
      %138 = sbr.rel (0) target = $region29
    $region28: #{_linear_fwd.1} parent=1 // pred_region
      %s140 = ssub.s32 128, 128
      %141 = vsyncadd [#allocation5], %s140
      %s143 = sshll.u32 [#allocation6], 4
      %s144 = int_to_ptr.vmem [resolvable:$true] %s143
      %146 = dma.vmem_to_hbm [thread:$0]  %s144, 128, %s3, [#allocation5]
    $region29: #{_linear_fwd.1} parent=1 // pred_fallthru
      _
    // Predicated region
    $region30: #{_linear_fwd.1} parent=1 // pred_check
      _
    $region31: #{_linear_fwd.1} parent=1 // pred_check_branch
      %148 = sbr.rel (0) target = $region33
    $region32: #{_linear_fwd.1} parent=1 // pred_region
      %149 = dma.done [#allocation5], 128
    $region33: #{_linear_fwd.1} parent=1 // pred_fallthru
      _
    %150 = vsyncpa [#allocation4], 1
    %151 = vsyncpa [#allocation5], 1

</llo_original>
